<compile_context>
chip_gen: v5e
topology: v5e:2x2
jax: 0.10.0
libtpu: 0.0.40
codegen_flags: <defaults>
</compile_context>

<pallas_src>
import numpy as np

import jax
import jax.numpy as jnp
from jax.experimental import pallas as pl
from jax.experimental.pallas import tpu as pltpu


def leniachem_step(x, kernels, c0, c1, m, s, h, T,
                   *, max_potential=1.0, update_rate=1.0, update_clip='hard'):
    """One LeniaChem step.  x: (B, C, Z, Y, X) float32.

    kernels/c0/c1/m/s/h/T are module parameters and are folded host-side into
    the two MXU weight matrices (they must be concrete, not traced).
    """
    B, C, Z, Y, X = x.shape
    N, SZ, SY, SX = kernels.shape
    RZ, RY, RX = SZ // 2, SY // 2, SX // 2
    YX = Y * X
    CZ = C * Z
    NZ = N * Z

    # rand_mask == floor(U[0,1) + 1.0) == 1 everywhere for update_rate == 1.0,
    # so it is a no-op (matches torch semantics exactly).
    # TODO(synk): stochastic update masking (pltpu.prng_*) for update_rate < 1.
    assert update_rate == 1.0

    # Alive-mask max-pool geometry (kernel_size = min(3, dim), spheric pad).
    KZ, KY, KX = min(3, Z), min(3, Y), min(3, X)
    PZ, PY, PX = KZ // 2, KY // 2, KX // 2

    # ------------------- host-side constant folding ----------------------
    kern_np = np.asarray(kernels, dtype=np.float64)
    c0_np = np.asarray(c0).astype(np.int64)
    c1_np = np.asarray(c1).astype(np.int64)
    m_np = np.asarray(m, dtype=np.float64)
    s_np = np.asarray(s, dtype=np.float64)
    h_np = np.asarray(h, dtype=np.float64)
    T_f = float(np.asarray(T))

    used = sorted({int(v) for v in c0_np})          # source channels in use
    u_index = {c: i for i, c in enumerate(used)}
    U = len(used)
    n_xy = SY * SX
    bias_row = U * n_xy * Z                          # start of ones block
    KW = bias_row + Z                                # slab-stack rows

    # gfunc(p) = exp(-((p - m) * alpha)^2) * 2 - 1,  alpha = 1/(sqrt(2)*s).
    alpha = 1.0 / (np.sqrt(2.0) * s_np)

    # Perception weights: fold taps * alpha + circulant Z-wrap + (-m*alpha)
    # bias (via the ones block) into one (N*Z, KW) matrix.
    Wp = np.zeros((NZ, KW), dtype=np.float64)
    for n in range(N):
        ui = u_index[int(c0_np[n])]
        a = alpha[n]
        for dz in range(SZ):
            for dy in range(SY):
                for dx in range(SX):
                    w = kern_np[n, dz, dy, dx] * a
                    col_base = (ui * n_xy + dy * SX + dx) * Z
                    for z_out in range(Z):
                        z_in = (z_out + dz - RZ) % Z
                        Wp[n * Z + z_out, col_base + z_in] += w
        for z_out in range(Z):
            Wp[n * Z + z_out, bias_row] += -m_np[n] * a

    # Field scatter: fold h/T and the c1 coupling into a (C*Z, N*Z) matrix.
    Hs = np.zeros((CZ, NZ), dtype=np.float64)
    for n in range(N):
        c = int(c1_np[n])
        for z in range(Z):
            Hs[c * Z + z, n * Z + z] = h_np[n] / T_f

    Wp_j = jnp.asarray(Wp, dtype=jnp.float32)
    Hs_j = jnp.asarray(Hs, dtype=jnp.float32)

    # Lane-dense layout (B, C*Z, Y*X); Y*X -> 128 lanes, C*Z -> sublanes.
    x_l = x.reshape(B, CZ, YX).astype(jnp.float32)
    thr = x_l[0, 0, 0].reshape(1)                    # alive threshold scalar

    x_pow2 = X > 0 and (X & (X - 1)) == 0

    # --------------------------- the kernel ------------------------------
    def kernel(thr_ref, wp_ref, hs_ref, x_ref, out_ref, stack_ref):
        xall = x_ref[...]                            # (C*Z, Y*X)

        def lane_xpos(rows):
            lane = jax.lax.broadcasted_iota(jnp.int32, (rows, YX), 1)
            if x_pow2:
                return lane & (X - 1)
            # TODO(synk): verify vector int-mod lowering for non-pow2 X.
            return lane % X

        xpos_z = lane_xpos(Z)
        xpos_cz = lane_xpos(CZ)

        # ---- circular-shift helpers on lane-dense slabs ----------------
        # pltpu.roll matches jnp.roll: out[i] = in[(i - shift) % size].
        def roll_lane(v, amt):
            amt = amt % YX
            return v if amt == 0 else pltpu.roll(v, amt, axis=1)

        def shift_x(v, sx, xp):
            # out[.., y, x] = v[.., y, (x - sx) mod X]  (per-row circular)
            sx = sx % X
            if sx == 0:
                return v
            main = roll_lane(v, sx)
            fix = roll_lane(v, sx - X)   # lanes that crossed a Y-row boundary
            return jnp.where(xp < sx, fix, main)

        def shift_y(v, sy):
            # flattened Y*X lane axis wraps correctly for whole-row shifts
            return roll_lane(v, (sy % Y) * X)

        # ---- build torus-(y,x)-shifted slab stack (the MXU rhs) ----------
        # One set of SY*SX slabs per *used* source channel; all lenia kernels
        # sharing that channel reuse them through Wp.
        for ui, c in enumerate(used):
            xc = xall[c * Z:(c + 1) * Z]             # (Z, Y*X) source slab
            for dy in range(SY):
                xy = shift_y(xc, RY - dy)
                for dx in range(SX):
                    slab = shift_x(xy, RX - dx, xpos_z)
                    row = (ui * n_xy + dy * SX + dx) * Z
                    stack_ref[row:row + Z, :] = slab
        stack_ref[bias_row:bias_row + Z, :] = jnp.ones((Z, YX), jnp.float32)

        # ---- perception + growth + field scatter (MXU + EUP) -------------
        t = jnp.dot(wp_ref[...], stack_ref[...],
                    preferred_element_type=jnp.float32)          # (N*Z, Y*X)
        g = jnp.exp(-(t * t)) * 2.0 - 1.0                         # growth
        pot = xall + jnp.dot(hs_ref[...], g,
                             preferred_element_type=jnp.float32)  # (C*Z, Y*X)

        if update_clip == 'hard':
            pot = jnp.clip(pot, 0.0, max_potential)
        elif update_clip == 'soft':
            pot = jax.nn.sigmoid((pot - max_potential / 2.0)
                                 * (10.0 / max_potential))
        # update_clip is None -> no clipping

        # ---- separable circular max-pool + alive threshold ---------------
        mx = pot
        for ox in range(-PX, KX - PX):
            if ox != 0:
                mx = jnp.maximum(mx, shift_x(pot, -ox, xpos_cz))
        mxy = mx
        for oy in range(-PY, KY - PY):
            if oy != 0:
                mxy = jnp.maximum(mxy, shift_y(mx, -oy))
        th = thr_ref[0]
        for c in range(C):
            blk = mxy[c * Z:(c + 1) * Z]
            mz = blk
            for oz in range(-PZ, KZ - PZ):
                if oz != 0:
                    mz = jnp.maximum(mz, pltpu.roll(blk, (-oz) % Z, axis=0))
            out_ref[c * Z:(c + 1) * Z, :] = jnp.where(
                mz >= th, pot[c * Z:(c + 1) * Z], 0.0)

    # --------------------------- pallas_call -----------------------------
    smem = pl.BlockSpec(memory_space=pltpu.MemorySpace.SMEM)
    vol_spec = pl.BlockSpec((None, CZ, YX), lambda b: (b, 0, 0))

    cost = pl.CostEstimate(
        flops=int(B * (2 * NZ * KW * YX + 2 * CZ * NZ * YX
                       + 8 * NZ * YX + 20 * CZ * YX)),
        transcendentals=int(B * NZ * YX),
        bytes_accessed=int(2 * B * CZ * YX * 4 + (NZ * KW + CZ * NZ + 1) * 4),
    )

    out_l = pl.pallas_call(
        kernel,
        out_shape=jax.ShapeDtypeStruct((B, CZ, YX), jnp.float32),
        grid=(B,),
        in_specs=[smem,                                            # thr
                  pl.BlockSpec((NZ, KW), lambda b: (0, 0)),        # Wp
                  pl.BlockSpec((CZ, NZ), lambda b: (0, 0)),        # Hs
                  vol_spec],                                       # x
        out_specs=vol_spec,
        scratch_shapes=[pltpu.VMEM((KW, YX), jnp.float32)],        # slab stack
        compiler_params=pltpu.CompilerParams(
            dimension_semantics=("parallel",)),
        cost_estimate=cost,
    )(thr, Wp_j, Hs_j, x_l)

    return out_l.reshape(B, C, Z, Y, X)


def leniachem_step_reference(x, kernels, c0, c1, m, s, h, T,
                             *, max_potential=1.0, update_clip='hard'):
    """Pure-JAX reference mirroring the PyTorch forward (update_rate=1.0).

    Also returns the pooled max so the test can exclude elements sitting on
    the (discontinuous) alive-threshold boundary.
    """
    B, C, Z, Y, X = x.shape
    N, SZ, SY, SX = kernels.shape
    RZ, RY, RX = SZ // 2, SY // 2, SX // 2
    field = jnp.zeros_like(x)
    for n in range(N):
        xc = x[:, int(c0[n])]
        xp = jnp.pad(xc, ((0, 0), (RZ, RZ), (RY, RY), (RX, RX)), mode='wrap')
        perc = jnp.zeros_like(xc)
        for dz in range(SZ):
            for dy in range(SY):
                for dx in range(SX):
                    perc = perc + kernels[n, dz, dy, dx] * \
                        xp[:, dz:dz + Z, dy:dy + Y, dx:dx + X]
        g = jnp.exp(-(perc - m[n]) ** 2 / (2.0 * s[n] ** 2)) * 2.0 - 1.0
        field = field.at[:, int(c1[n])].add(h[n] * g)
    pot = x + (1.0 / T) * field
    if update_clip == 'hard':
        pot = jnp.clip(pot, 0.0, max_potential)
    elif update_clip == 'soft':
        pot = jax.nn.sigmoid((pot - max_potential / 2.0) * 10.0 / max_potential)
    KZ, KY, KX = min(3, Z), min(3, Y), min(3, X)
    pp = jnp.pad(pot, ((0, 0), (0, 0), (KZ // 2, KZ // 2),
                       (KY // 2, KY // 2), (KX // 2, KX // 2)), mode='wrap')
    mx = pp[:, :, 0:Z, 0:Y, 0:X]
    for dz in range(KZ):
        for dy in range(KY):
            for dx in range(KX):
                mx = jnp.maximum(mx, pp[:, :, dz:dz + Z, dy:dy + Y, dx:dx + X])
    alive = (mx >= x[0, 0, 0, 0, 0]).astype(pot.dtype)
    return pot * alive, mx


if __name__ == "__main__":
    B, C, Z, Y, X = 2, 3, 8, 8, 16    # Y*X = 128 -> lane-dense, Z = 8 sublanes
    N = 5                             # number of lenia kernels
    R = 1                             # kernel radius -> 3x3x3 conv kernels

    key = jax.random.PRNGKey(0)
    kx_key, kk_key = jax.random.split(key)
    x = jax.random.uniform(kx_key, (B, C, Z, Y, X), dtype=jnp.float32)

    # TODO(synk): CPPN-generated kernels (pytorchneat RecurrentNetwork) replaced
    # with deterministic random kernels of the same shape + normalization.
    # They are deliberately asymmetric so the circular-conv tap orientation
    # (roll direction / circulant construction) is verified against the ref.
    raw = jax.random.uniform(kk_key, (N, 2 * R + 1, 2 * R + 1, 2 * R + 1),
                             dtype=jnp.float32)
    kernels = raw / jnp.sum(raw, axis=(1, 2, 3), keepdims=True)

    # kernel keys (c0, c1, k): channel couplings
    c0 = jnp.array([0, 0, 1, 2, 2], jnp.int32)
    c1 = jnp.array([0, 1, 2, 2, 0], jnp.int32)
    m = jnp.array([0.15, 0.22, 0.30, 0.18, 0.25], jnp.float32)
    s = jnp.array([0.05, 0.06, 0.08, 0.07, 0.09], jnp.float32)
    h = jnp.array([0.30, 0.40, 0.50, 0.35, 0.45], jnp.float32)
    T = 10.0

    out = leniachem_step(x, kernels, c0, c1, m, s, h, T,
                         max_potential=1.0, update_rate=1.0,
                         update_clip='hard')
    out = jax.block_until_ready(out)
    assert out.shape == (B, C, Z, Y, X)

    ref, ref_pool = leniachem_step_reference(x, kernels, c0, c1, m, s, h, T,
                                             max_potential=1.0,
                                             update_clip='hard')
    thr_v = x[0, 0, 0, 0, 0]
    # The alive mask (pooled_max >= x[0,0,0,0,0]) is a hard threshold; exclude
    # elements whose pooled max sits within 5e-3 of it so sub-millionth MXU
    # rounding / summation-order differences cannot flip the mask.
    stable = (jnp.abs(ref_pool - thr_v) > 5e-3).astype(jnp.float32)
    err = float(jnp.max(jnp.abs((out - ref) * stable)))
    assert err < 2e-3, err
    print("KERNEL_OK")
</pallas_src>

<mosaic_0001>
module attributes {stable_mosaic.version = 11 : i64} {
  func.func @kernel(%arg0: i32, %arg1: memref<1xf32, #tpu.memory_space<smem>>, %arg2: memref<40x224xf32, #tpu.memory_space<vmem>>, %arg3: memref<24x40xf32, #tpu.memory_space<vmem>>, %arg4: memref<1x24x128xf32, #tpu.memory_space<vmem>>, %arg5: memref<1x24x128xf32, #tpu.memory_space<vmem>>, %arg6: memref<224x128xf32, #tpu.memory_space<vmem>>) attributes {dimension_semantics = [#tpu.dimension_semantics<parallel>], iteration_bounds = array<i64: 2>, scalar_prefetch = 0 : i64, scratch_operands = 1 : i64, tpu.core_type = #tpu.core_type<tc>, window_params = [{transform_indices = @transform_0, window_bounds = array<i64: 1>}, {pipeline_mode = #tpu.pipeline_mode<synchronous>, transform_indices = @transform_1, window_bounds = array<i64: 40, 224>}, {pipeline_mode = #tpu.pipeline_mode<synchronous>, transform_indices = @transform_2, window_bounds = array<i64: 24, 40>}, {transform_indices = @transform_3, window_bounds = array<i64: 1, 24, 128>}, {transform_indices = @transform_4, window_bounds = array<i64: 1, 24, 128>}]} {
    %c0 = arith.constant 0 : index
    %c0_0 = arith.constant 0 : index
    %c0_1 = arith.constant 0 : index
    %0 = vector.load %arg4[%c0, %c0_0, %c0_1] : memref<1x24x128xf32, #tpu.memory_space<vmem>>, vector<1x24x128xf32>
    %1 = vector.shape_cast %0 : vector<1x24x128xf32> to vector<24x128xf32>
    %2 = tpu.iota {dimensions = array<i32: 1>} : vector<8x128xi32>
    %c15_i32 = arith.constant 15 : i32
    %3 = vector.broadcast %c15_i32 : i32 to vector<8x128xi32>
    %4 = arith.andi %2, %3 : vector<8x128xi32>
    %5 = tpu.iota {dimensions = array<i32: 1>} : vector<24x128xi32>
    %c15_i32_2 = arith.constant 15 : i32
    %6 = vector.broadcast %c15_i32_2 : i32 to vector<24x128xi32>
    %7 = arith.andi %5, %6 : vector<24x128xi32>
    %8 = vector.extract_strided_slice %1 {offsets = [0, 0], sizes = [8, 128], strides = [1, 1]} : vector<24x128xf32> to vector<8x128xf32>
    %c16_i32 = arith.constant 16 : i32
    %9 = tpu.dynamic_rotate %8 by %c16_i32 dim 1 : vector<8x128xf32>, i32 -> vector<8x128xf32>
    %c1_i32 = arith.constant 1 : i32
    %10 = tpu.dynamic_rotate %9 by %c1_i32 dim 1 : vector<8x128xf32>, i32 -> vector<8x128xf32>
    %c113_i32 = arith.constant 113 : i32
    %11 = tpu.dynamic_rotate %9 by %c113_i32 dim 1 : vector<8x128xf32>, i32 -> vector<8x128xf32>
    %c1_i32_3 = arith.constant 1 : i32
    %12 = vector.broadcast %c1_i32_3 : i32 to vector<8x128xi32>
    %13 = arith.cmpi slt, %4, %12 : vector<8x128xi32>
    %14 = arith.select %13, %11, %10 : vector<8x128xi1>, vector<8x128xf32>
    %c0_4 = arith.constant 0 : index
    %c0_5 = arith.constant 0 : index
    %15 = vector.load %arg6[%c0_4, %c0_5] : memref<224x128xf32, #tpu.memory_space<vmem>>, vector<8x128xf32>
    tpu.vector_store %arg6[%c0_4, %c0_5], %14 {strides = array<i32>} : memref<224x128xf32, #tpu.memory_space<vmem>>, vector<8x128xf32>,
    %c8 = arith.constant 8 : index
    %c0_6 = arith.constant 0 : index
    %16 = vector.load %arg6[%c8, %c0_6] : memref<224x128xf32, #tpu.memory_space<vmem>>, vector<8x128xf32>
    tpu.vector_store %arg6[%c8, %c0_6], %9 {strides = array<i32>} : memref<224x128xf32, #tpu.memory_space<vmem>>, vector<8x128xf32>,
    %c15_i32_7 = arith.constant 15 : i32
    %17 = tpu.dynamic_rotate %9 by %c15_i32_7 dim 1 : vector<8x128xf32>, i32 -> vector<8x128xf32>
    %c127_i32 = arith.constant 127 : i32
    %18 = tpu.dynamic_rotate %9 by %c127_i32 dim 1 : vector<8x128xf32>, i32 -> vector<8x128xf32>
    %c15_i32_8 = arith.constant 15 : i32
    %19 = vector.broadcast %c15_i32_8 : i32 to vector<8x128xi32>
    %20 = arith.cmpi slt, %4, %19 : vector<8x128xi32>
    %21 = arith.select %20, %18, %17 : vector<8x128xi1>, vector<8x128xf32>
    %c16 = arith.constant 16 : index
    %c0_9 = arith.constant 0 : index
    %22 = vector.load %arg6[%c16, %c0_9] : memref<224x128xf32, #tpu.memory_space<vmem>>, vector<8x128xf32>
    tpu.vector_store %arg6[%c16, %c0_9], %21 {strides = array<i32>} : memref<224x128xf32, #tpu.memory_space<vmem>>, vector<8x128xf32>,
    %c1_i32_10 = arith.constant 1 : i32
    %23 = tpu.dynamic_rotate %8 by %c1_i32_10 dim 1 : vector<8x128xf32>, i32 -> vector<8x128xf32>
    %c113_i32_11 = arith.constant 113 : i32
    %24 = tpu.dynamic_rotate %8 by %c113_i32_11 dim 1 : vector<8x128xf32>, i32 -> vector<8x128xf32>
    %c1_i32_12 = arith.constant 1 : i32
    %25 = vector.broadcast %c1_i32_12 : i32 to vector<8x128xi32>
    %26 = arith.cmpi slt, %4, %25 : vector<8x128xi32>
    %27 = arith.select %26, %24, %23 : vector<8x128xi1>, vector<8x128xf32>
    %c24 = arith.constant 24 : index
    %c0_13 = arith.constant 0 : index
    %28 = vector.load %arg6[%c24, %c0_13] : memref<224x128xf32, #tpu.memory_space<vmem>>, vector<8x128xf32>
    tpu.vector_store %arg6[%c24, %c0_13], %27 {strides = array<i32>} : memref<224x128xf32, #tpu.memory_space<vmem>>, vector<8x128xf32>,
    %c32 = arith.constant 32 : index
    %c0_14 = arith.constant 0 : index
    %29 = vector.load %arg6[%c32, %c0_14] : memref<224x128xf32, #tpu.memory_space<vmem>>, vector<8x128xf32>
    tpu.vector_store %arg6[%c32, %c0_14], %8 {strides = array<i32>} : memref<224x128xf32, #tpu.memory_space<vmem>>, vector<8x128xf32>,
    %c15_i32_15 = arith.constant 15 : i32
    %30 = tpu.dynamic_rotate %8 by %c15_i32_15 dim 1 : vector<8x128xf32>, i32 -> vector<8x128xf32>
    %c127_i32_16 = arith.constant 127 : i32
    %31 = tpu.dynamic_rotate %8 by %c127_i32_16 dim 1 : vector<8x128xf32>, i32 -> vector<8x128xf32>
    %c15_i32_17 = arith.constant 15 : i32
    %32 = vector.broadcast %c15_i32_17 : i32 to vector<8x128xi32>
    %33 = arith.cmpi slt, %4, %32 : vector<8x128xi32>
    %34 = arith.select %33, %31, %30 : vector<8x128xi1>, vector<8x128xf32>
    %c40 = arith.constant 40 : index
    %c0_18 = arith.constant 0 : index
    %35 = vector.load %arg6[%c40, %c0_18] : memref<224x128xf32, #tpu.memory_space<vmem>>, vector<8x128xf32>
    tpu.vector_store %arg6[%c40, %c0_18], %34 {strides = array<i32>} : memref<224x128xf32, #tpu.memory_space<vmem>>, vector<8x128xf32>,
    %c112_i32 = arith.constant 112 : i32
    %36 = tpu.dynamic_rotate %8 by %c112_i32 dim 1 : vector<8x128xf32>, i32 -> vector<8x128xf32>
    %c1_i32_19 = arith.constant 1 : i32
    %37 = tpu.dynamic_rotate %36 by %c1_i32_19 dim 1 : vector<8x128xf32>, i32 -> vector<8x128xf32>
    %c113_i32_20 = arith.constant 113 : i32
    %38 = tpu.dynamic_rotate %36 by %c113_i32_20 dim 1 : vector<8x128xf32>, i32 -> vector<8x128xf32>
    %c1_i32_21 = arith.constant 1 : i32
    %39 = vector.broadcast %c1_i32_21 : i32 to vector<8x128xi32>
    %40 = arith.cmpi slt, %4, %39 : vector<8x128xi32>
    %41 = arith.select %40, %38, %37 : vector<8x128xi1>, vector<8x128xf32>
    %c48 = arith.constant 48 : index
    %c0_22 = arith.constant 0 : index
    %42 = vector.load %arg6[%c48, %c0_22] : memref<224x128xf32, #tpu.memory_space<vmem>>, vector<8x128xf32>
    tpu.vector_store %arg6[%c48, %c0_22], %41 {strides = array<i32>} : memref<224x128xf32, #tpu.memory_space<vmem>>, vector<8x128xf32>,
    %c56 = arith.constant 56 : index
    %c0_23 = arith.constant 0 : index
    %43 = vector.load %arg6[%c56, %c0_23] : memref<224x128xf32, #tpu.memory_space<vmem>>, vector<8x128xf32>
    tpu.vector_store %arg6[%c56, %c0_23], %36 {strides = array<i32>} : memref<224x128xf32, #tpu.memory_space<vmem>>, vector<8x128xf32>,
    %c15_i32_24 = arith.constant 15 : i32
    %44 = tpu.dynamic_rotate %36 by %c15_i32_24 dim 1 : vector<8x128xf32>, i32 -> vector<8x128xf32>
    %c127_i32_25 = arith.constant 127 : i32
    %45 = tpu.dynamic_rotate %36 by %c127_i32_25 dim 1 : vector<8x128xf32>, i32 -> vector<8x128xf32>
    %c15_i32_26 = arith.constant 15 : i32
    %46 = vector.broadcast %c15_i32_26 : i32 to vector<8x128xi32>
    %47 = arith.cmpi slt, %4, %46 : vector<8x128xi32>
    %48 = arith.select %47, %45, %44 : vector<8x128xi1>, vector<8x128xf32>
    %c64 = arith.constant 64 : index
    %c0_27 = arith.constant 0 : index
    %49 = vector.load %arg6[%c64, %c0_27] : memref<224x128xf32, #tpu.memory_space<vmem>>, vector<8x128xf32>
    tpu.vector_store %arg6[%c64, %c0_27], %48 {strides = array<i32>} : memref<224x128xf32, #tpu.memory_space<vmem>>, vector<8x128xf32>,
    %50 = vector.extract_strided_slice %1 {offsets = [8, 0], sizes = [8, 128], strides = [1, 1]} : vector<24x128xf32> to vector<8x128xf32>
    %c16_i32_28 = arith.constant 16 : i32
    %51 = tpu.dynamic_rotate %50 by %c16_i32_28 dim 1 : vector<8x128xf32>, i32 -> vector<8x128xf32>
    %c1_i32_29 = arith.constant 1 : i32
    %52 = tpu.dynamic_rotate %51 by %c1_i32_29 dim 1 : vector<8x128xf32>, i32 -> vector<8x128xf32>
    %c113_i32_30 = arith.constant 113 : i32
    %53 = tpu.dynamic_rotate %51 by %c113_i32_30 dim 1 : vector<8x128xf32>, i32 -> vector<8x128xf32>
    %c1_i32_31 = arith.constant 1 : i32
    %54 = vector.broadcast %c1_i32_31 : i32 to vector<8x128xi32>
    %55 = arith.cmpi slt, %4, %54 : vector<8x128xi32>
    %56 = arith.select %55, %53, %52 : vector<8x128xi1>, vector<8x128xf32>
    %c72 = arith.constant 72 : index
    %c0_32 = arith.constant 0 : index
    %57 = vector.load %arg6[%c72, %c0_32] : memref<224x128xf32, #tpu.memory_space<vmem>>, vector<8x128xf32>
    tpu.vector_store %arg6[%c72, %c0_32], %56 {strides = array<i32>} : memref<224x128xf32, #tpu.memory_space<vmem>>, vector<8x128xf32>,
    %c80 = arith.constant 80 : index
    %c0_33 = arith.constant 0 : index
    %58 = vector.load %arg6[%c80, %c0_33] : memref<224x128xf32, #tpu.memory_space<vmem>>, vector<8x128xf32>
    tpu.vector_store %arg6[%c80, %c0_33], %51 {strides = array<i32>} : memref<224x128xf32, #tpu.memory_space<vmem>>, vector<8x128xf32>,
    %c15_i32_34 = arith.constant 15 : i32
    %59 = tpu.dynamic_rotate %51 by %c15_i32_34 dim 1 : vector<8x128xf32>, i32 -> vector<8x128xf32>
    %c127_i32_35 = arith.constant 127 : i32
    %60 = tpu.dynamic_rotate %51 by %c127_i32_35 dim 1 : vector<8x128xf32>, i32 -> vector<8x128xf32>
    %c15_i32_36 = arith.constant 15 : i32
    %61 = vector.broadcast %c15_i32_36 : i32 to vector<8x128xi32>
    %62 = arith.cmpi slt, %4, %61 : vector<8x128xi32>
    %63 = arith.select %62, %60, %59 : vector<8x128xi1>, vector<8x128xf32>
    %c88 = arith.constant 88 : index
    %c0_37 = arith.constant 0 : index
    %64 = vector.load %arg6[%c88, %c0_37] : memref<224x128xf32, #tpu.memory_space<vmem>>, vector<8x128xf32>
    tpu.vector_store %arg6[%c88, %c0_37], %63 {strides = array<i32>} : memref<224x128xf32, #tpu.memory_space<vmem>>, vector<8x128xf32>,
    %c1_i32_38 = arith.constant 1 : i32
    %65 = tpu.dynamic_rotate %50 by %c1_i32_38 dim 1 : vector<8x128xf32>, i32 -> vector<8x128xf32>
    %c113_i32_39 = arith.constant 113 : i32
    %66 = tpu.dynamic_rotate %50 by %c113_i32_39 dim 1 : vector<8x128xf32>, i32 -> vector<8x128xf32>
    %c1_i32_40 = arith.constant 1 : i32
    %67 = vector.broadcast %c1_i32_40 : i32 to vector<8x128xi32>
    %68 = arith.cmpi slt, %4, %67 : vector<8x128xi32>
    %69 = arith.select %68, %66, %65 : vector<8x128xi1>, vector<8x128xf32>
    %c96 = arith.constant 96 : index
    %c0_41 = arith.constant 0 : index
    %70 = vector.load %arg6[%c96, %c0_41] : memref<224x128xf32, #tpu.memory_space<vmem>>, vector<8x128xf32>
    tpu.vector_store %arg6[%c96, %c0_41], %69 {strides = array<i32>} : memref<224x128xf32, #tpu.memory_space<vmem>>, vector<8x128xf32>,
    %c104 = arith.constant 104 : index
    %c0_42 = arith.constant 0 : index
    %71 = vector.load %arg6[%c104, %c0_42] : memref<224x128xf32, #tpu.memory_space<vmem>>, vector<8x128xf32>
    tpu.vector_store %arg6[%c104, %c0_42], %50 {strides = array<i32>} : memref<224x128xf32, #tpu.memory_space<vmem>>, vector<8x128xf32>,
    %c15_i32_43 = arith.constant 15 : i32
    %72 = tpu.dynamic_rotate %50 by %c15_i32_43 dim 1 : vector<8x128xf32>, i32 -> vector<8x128xf32>
    %c127_i32_44 = arith.constant 127 : i32
    %73 = tpu.dynamic_rotate %50 by %c127_i32_44 dim 1 : vector<8x128xf32>, i32 -> vector<8x128xf32>
    %c15_i32_45 = arith.constant 15 : i32
    %74 = vector.broadcast %c15_i32_45 : i32 to vector<8x128xi32>
    %75 = arith.cmpi slt, %4, %74 : vector<8x128xi32>
    %76 = arith.select %75, %73, %72 : vector<8x128xi1>, vector<8x128xf32>
    %c112 = arith.constant 112 : index
    %c0_46 = arith.constant 0 : index
    %77 = vector.load %arg6[%c112, %c0_46] : memref<224x128xf32, #tpu.memory_space<vmem>>, vector<8x128xf32>
    tpu.vector_store %arg6[%c112, %c0_46], %76 {strides = array<i32>} : memref<224x128xf32, #tpu.memory_space<vmem>>, vector<8x128xf32>,
    %c112_i32_47 = arith.constant 112 : i32
    %78 = tpu.dynamic_rotate %50 by %c112_i32_47 dim 1 : vector<8x128xf32>, i32 -> vector<8x128xf32>
    %c1_i32_48 = arith.constant 1 : i32
    %79 = tpu.dynamic_rotate %78 by %c1_i32_48 dim 1 : vector<8x128xf32>, i32 -> vector<8x128xf32>
    %c113_i32_49 = arith.constant 113 : i32
    %80 = tpu.dynamic_rotate %78 by %c113_i32_49 dim 1 : vector<8x128xf32>, i32 -> vector<8x128xf32>
    %c1_i32_50 = arith.constant 1 : i32
    %81 = vector.broadcast %c1_i32_50 : i32 to vector<8x128xi32>
    %82 = arith.cmpi slt, %4, %81 : vector<8x128xi32>
    %83 = arith.select %82, %80, %79 : vector<8x128xi1>, vector<8x128xf32>
    %c120 = arith.constant 120 : index
    %c0_51 = arith.constant 0 : index
    %84 = vector.load %arg6[%c120, %c0_51] : memref<224x128xf32, #tpu.memory_space<vmem>>, vector<8x128xf32>
    tpu.vector_store %arg6[%c120, %c0_51], %83 {strides = array<i32>} : memref<224x128xf32, #tpu.memory_space<vmem>>, vector<8x128xf32>,
    %c128 = arith.constant 128 : index
    %c0_52 = arith.constant 0 : index
    %85 = vector.load %arg6[%c128, %c0_52] : memref<224x128xf32, #tpu.memory_space<vmem>>, vector<8x128xf32>
    tpu.vector_store %arg6[%c128, %c0_52], %78 {strides = array<i32>} : memref<224x128xf32, #tpu.memory_space<vmem>>, vector<8x128xf32>,
    %c15_i32_53 = arith.constant 15 : i32
    %86 = tpu.dynamic_rotate %78 by %c15_i32_53 dim 1 : vector<8x128xf32>, i32 -> vector<8x128xf32>
    %c127_i32_54 = arith.constant 127 : i32
    %87 = tpu.dynamic_rotate %78 by %c127_i32_54 dim 1 : vector<8x128xf32>, i32 -> vector<8x128xf32>
    %c15_i32_55 = arith.constant 15 : i32
    %88 = vector.broadcast %c15_i32_55 : i32 to vector<8x128xi32>
    %89 = arith.cmpi slt, %4, %88 : vector<8x128xi32>
    %90 = arith.select %89, %87, %86 : vector<8x128xi1>, vector<8x128xf32>
    %c136 = arith.constant 136 : index
    %c0_56 = arith.constant 0 : index
    %91 = vector.load %arg6[%c136, %c0_56] : memref<224x128xf32, #tpu.memory_space<vmem>>, vector<8x128xf32>
    tpu.vector_store %arg6[%c136, %c0_56], %90 {strides = array<i32>} : memref<224x128xf32, #tpu.memory_space<vmem>>, vector<8x128xf32>,
    %92 = vector.extract_strided_slice %1 {offsets = [16, 0], sizes = [8, 128], strides = [1, 1]} : vector<24x128xf32> to vector<8x128xf32>
    %c16_i32_57 = arith.constant 16 : i32
    %93 = tpu.dynamic_rotate %92 by %c16_i32_57 dim 1 : vector<8x128xf32>, i32 -> vector<8x128xf32>
    %c1_i32_58 = arith.constant 1 : i32
    %94 = tpu.dynamic_rotate %93 by %c1_i32_58 dim 1 : vector<8x128xf32>, i32 -> vector<8x128xf32>
    %c113_i32_59 = arith.constant 113 : i32
    %95 = tpu.dynamic_rotate %93 by %c113_i32_59 dim 1 : vector<8x128xf32>, i32 -> vector<8x128xf32>
    %c1_i32_60 = arith.constant 1 : i32
    %96 = vector.broadcast %c1_i32_60 : i32 to vector<8x128xi32>
    %97 = arith.cmpi slt, %4, %96 : vector<8x128xi32>
    %98 = arith.select %97, %95, %94 : vector<8x128xi1>, vector<8x128xf32>
    %c144 = arith.constant 144 : index
    %c0_61 = arith.constant 0 : index
    %99 = vector.load %arg6[%c144, %c0_61] : memref<224x128xf32, #tpu.memory_space<vmem>>, vector<8x128xf32>
    tpu.vector_store %arg6[%c144, %c0_61], %98 {strides = array<i32>} : memref<224x128xf32, #tpu.memory_space<vmem>>, vector<8x128xf32>,
    %c152 = arith.constant 152 : index
    %c0_62 = arith.constant 0 : index
    %100 = vector.load %arg6[%c152, %c0_62] : memref<224x128xf32, #tpu.memory_space<vmem>>, vector<8x128xf32>
    tpu.vector_store %arg6[%c152, %c0_62], %93 {strides = array<i32>} : memref<224x128xf32, #tpu.memory_space<vmem>>, vector<8x128xf32>,
    %c15_i32_63 = arith.constant 15 : i32
    %101 = tpu.dynamic_rotate %93 by %c15_i32_63 dim 1 : vector<8x128xf32>, i32 -> vector<8x128xf32>
    %c127_i32_64 = arith.constant 127 : i32
    %102 = tpu.dynamic_rotate %93 by %c127_i32_64 dim 1 : vector<8x128xf32>, i32 -> vector<8x128xf32>
    %c15_i32_65 = arith.constant 15 : i32
    %103 = vector.broadcast %c15_i32_65 : i32 to vector<8x128xi32>
    %104 = arith.cmpi slt, %4, %103 : vector<8x128xi32>
    %105 = arith.select %104, %102, %101 : vector<8x128xi1>, vector<8x128xf32>
    %c160 = arith.constant 160 : index
    %c0_66 = arith.constant 0 : index
    %106 = vector.load %arg6[%c160, %c0_66] : memref<224x128xf32, #tpu.memory_space<vmem>>, vector<8x128xf32>
    tpu.vector_store %arg6[%c160, %c0_66], %105 {strides = array<i32>} : memref<224x128xf32, #tpu.memory_space<vmem>>, vector<8x128xf32>,
    %c1_i32_67 = arith.constant 1 : i32
    %107 = tpu.dynamic_rotate %92 by %c1_i32_67 dim 1 : vector<8x128xf32>, i32 -> vector<8x128xf32>
    %c113_i32_68 = arith.constant 113 : i32
    %108 = tpu.dynamic_rotate %92 by %c113_i32_68 dim 1 : vector<8x128xf32>, i32 -> vector<8x128xf32>
    %c1_i32_69 = arith.constant 1 : i32
    %109 = vector.broadcast %c1_i32_69 : i32 to vector<8x128xi32>
    %110 = arith.cmpi slt, %4, %109 : vector<8x128xi32>
    %111 = arith.select %110, %108, %107 : vector<8x128xi1>, vector<8x128xf32>
    %c168 = arith.constant 168 : index
    %c0_70 = arith.constant 0 : index
    %112 = vector.load %arg6[%c168, %c0_70] : memref<224x128xf32, #tpu.memory_space<vmem>>, vector<8x128xf32>
    tpu.vector_store %arg6[%c168, %c0_70], %111 {strides = array<i32>} : memref<224x128xf32, #tpu.memory_space<vmem>>, vector<8x128xf32>,
    %c176 = arith.constant 176 : index
    %c0_71 = arith.constant 0 : index
    %113 = vector.load %arg6[%c176, %c0_71] : memref<224x128xf32, #tpu.memory_space<vmem>>, vector<8x128xf32>
    tpu.vector_store %arg6[%c176, %c0_71], %92 {strides = array<i32>} : memref<224x128xf32, #tpu.memory_space<vmem>>, vector<8x128xf32>,
    %c15_i32_72 = arith.constant 15 : i32
    %114 = tpu.dynamic_rotate %92 by %c15_i32_72 dim 1 : vector<8x128xf32>, i32 -> vector<8x128xf32>
    %c127_i32_73 = arith.constant 127 : i32
    %115 = tpu.dynamic_rotate %92 by %c127_i32_73 dim 1 : vector<8x128xf32>, i32 -> vector<8x128xf32>
    %c15_i32_74 = arith.constant 15 : i32
    %116 = vector.broadcast %c15_i32_74 : i32 to vector<8x128xi32>
    %117 = arith.cmpi slt, %4, %116 : vector<8x128xi32>
    %118 = arith.select %117, %115, %114 : vector<8x128xi1>, vector<8x128xf32>
    %c184 = arith.constant 184 : index
    %c0_75 = arith.constant 0 : index
    %119 = vector.load %arg6[%c184, %c0_75] : memref<224x128xf32, #tpu.memory_space<vmem>>, vector<8x128xf32>
    tpu.vector_store %arg6[%c184, %c0_75], %118 {strides = array<i32>} : memref<224x128xf32, #tpu.memory_space<vmem>>, vector<8x128xf32>,
    %c112_i32_76 = arith.constant 112 : i32
    %120 = tpu.dynamic_rotate %92 by %c112_i32_76 dim 1 : vector<8x128xf32>, i32 -> vector<8x128xf32>
    %c1_i32_77 = arith.constant 1 : i32
    %121 = tpu.dynamic_rotate %120 by %c1_i32_77 dim 1 : vector<8x128xf32>, i32 -> vector<8x128xf32>
    %c113_i32_78 = arith.constant 113 : i32
    %122 = tpu.dynamic_rotate %120 by %c113_i32_78 dim 1 : vector<8x128xf32>, i32 -> vector<8x128xf32>
    %c1_i32_79 = arith.constant 1 : i32
    %123 = vector.broadcast %c1_i32_79 : i32 to vector<8x128xi32>
    %124 = arith.cmpi slt, %4, %123 : vector<8x128xi32>
    %125 = arith.select %124, %122, %121 : vector<8x128xi1>, vector<8x128xf32>
    %c192 = arith.constant 192 : index
    %c0_80 = arith.constant 0 : index
    %126 = vector.load %arg6[%c192, %c0_80] : memref<224x128xf32, #tpu.memory_space<vmem>>, vector<8x128xf32>
    tpu.vector_store %arg6[%c192, %c0_80], %125 {strides = array<i32>} : memref<224x128xf32, #tpu.memory_space<vmem>>, vector<8x128xf32>,
    %c200 = arith.constant 200 : index
    %c0_81 = arith.constant 0 : index
    %127 = vector.load %arg6[%c200, %c0_81] : memref<224x128xf32, #tpu.memory_space<vmem>>, vector<8x128xf32>
    tpu.vector_store %arg6[%c200, %c0_81], %120 {strides = array<i32>} : memref<224x128xf32, #tpu.memory_space<vmem>>, vector<8x128xf32>,
    %c15_i32_82 = arith.constant 15 : i32
    %128 = tpu.dynamic_rotate %120 by %c15_i32_82 dim 1 : vector<8x128xf32>, i32 -> vector<8x128xf32>
    %c127_i32_83 = arith.constant 127 : i32
    %129 = tpu.dynamic_rotate %120 by %c127_i32_83 dim 1 : vector<8x128xf32>, i32 -> vector<8x128xf32>
    %c15_i32_84 = arith.constant 15 : i32
    %130 = vector.broadcast %c15_i32_84 : i32 to vector<8x128xi32>
    %131 = arith.cmpi slt, %4, %130 : vector<8x128xi32>
    %132 = arith.select %131, %129, %128 : vector<8x128xi1>, vector<8x128xf32>
    %c208 = arith.constant 208 : index
    %c0_85 = arith.constant 0 : index
    %133 = vector.load %arg6[%c208, %c0_85] : memref<224x128xf32, #tpu.memory_space<vmem>>, vector<8x128xf32>
    tpu.vector_store %arg6[%c208, %c0_85], %132 {strides = array<i32>} : memref<224x128xf32, #tpu.memory_space<vmem>>, vector<8x128xf32>,
    %cst = arith.constant 1.000000e+00 : f32
    %134 = vector.broadcast %cst : f32 to vector<8x128xf32>
    %c216 = arith.constant 216 : index
    %c0_86 = arith.constant 0 : index
    %135 = vector.load %arg6[%c216, %c0_86] : memref<224x128xf32, #tpu.memory_space<vmem>>, vector<8x128xf32>
    tpu.vector_store %arg6[%c216, %c0_86], %134 {strides = array<i32>} : memref<224x128xf32, #tpu.memory_space<vmem>>, vector<8x128xf32>,
    %c0_87 = arith.constant 0 : index
    %c0_88 = arith.constant 0 : index
    %136 = vector.load %arg2[%c0_87, %c0_88] : memref<40x224xf32, #tpu.memory_space<vmem>>, vector<40x224xf32>
    %c0_89 = arith.constant 0 : index
    %c0_90 = arith.constant 0 : index
    %137 = vector.load %arg6[%c0_89, %c0_90] : memref<224x128xf32, #tpu.memory_space<vmem>>, vector<224x128xf32>
    %cst_91 = arith.constant dense<0.000000e+00> : vector<40x128xf32>
    %138 = tpu.matmul %136, %137, %cst_91 {dimension_numbers = #tpu.dot_dimension_numbers<[1], [0], [0], [1], [0, 0, 1, 1], [], []>} : vector<40x224xf32>, vector<224x128xf32>, vector<40x128xf32> -> vector<40x128xf32>
    %139 = arith.mulf %138, %138 : vector<40x128xf32>
    %cst_92 = arith.constant 0.000000e+00 : f32
    %140 = vector.broadcast %cst_92 : f32 to vector<40x128xf32>
    %141 = arith.subf %140, %139 : vector<40x128xf32>
    %142 = math.exp %141 : vector<40x128xf32>
    %cst_93 = arith.constant 2.000000e+00 : f32
    %143 = vector.broadcast %cst_93 : f32 to vector<40x128xf32>
    %144 = arith.mulf %142, %143 : vector<40x128xf32>
    %cst_94 = arith.constant 1.000000e+00 : f32
    %145 = vector.broadcast %cst_94 : f32 to vector<40x128xf32>
    %146 = arith.subf %144, %145 : vector<40x128xf32>
    %c0_95 = arith.constant 0 : index
    %c0_96 = arith.constant 0 : index
    %147 = vector.load %arg3[%c0_95, %c0_96] : memref<24x40xf32, #tpu.memory_space<vmem>>, vector<24x40xf32>
    %cst_97 = arith.constant dense<0.000000e+00> : vector<24x128xf32>
    %148 = tpu.matmul %147, %146, %cst_97 {dimension_numbers = #tpu.dot_dimension_numbers<[1], [0], [0], [1], [0, 0, 1, 1], [], []>} : vector<24x40xf32>, vector<40x128xf32>, vector<24x128xf32> -> vector<24x128xf32>
    %149 = arith.addf %1, %148 : vector<24x128xf32>
    %cst_98 = arith.constant 0.000000e+00 : f32
    %cst_99 = arith.constant 1.000000e+00 : f32
    %150 = vector.broadcast %cst_98 : f32 to vector<24x128xf32>
    %151 = arith.maximumf %150, %149 : vector<24x128xf32>
    %152 = vector.broadcast %cst_99 : f32 to vector<24x128xf32>
    %153 = arith.minimumf %152, %151 : vector<24x128xf32>
    %c1_i32_100 = arith.constant 1 : i32
    %154 = tpu.dynamic_rotate %153 by %c1_i32_100 dim 1 : vector<24x128xf32>, i32 -> vector<24x128xf32>
    %c113_i32_101 = arith.constant 113 : i32
    %155 = tpu.dynamic_rotate %153 by %c113_i32_101 dim 1 : vector<24x128xf32>, i32 -> vector<24x128xf32>
    %c1_i32_102 = arith.constant 1 : i32
    %156 = vector.broadcast %c1_i32_102 : i32 to vector<24x128xi32>
    %157 = arith.cmpi slt, %7, %156 : vector<24x128xi32>
    %158 = arith.select %157, %155, %154 : vector<24x128xi1>, vector<24x128xf32>
    %159 = arith.maximumf %153, %158 : vector<24x128xf32>
    %c15_i32_103 = arith.constant 15 : i32
    %160 = tpu.dynamic_rotate %153 by %c15_i32_103 dim 1 : vector<24x128xf32>, i32 -> vector<24x128xf32>
    %c127_i32_104 = arith.constant 127 : i32
    %161 = tpu.dynamic_rotate %153 by %c127_i32_104 dim 1 : vector<24x128xf32>, i32 -> vector<24x128xf32>
    %c15_i32_105 = arith.constant 15 : i32
    %162 = vector.broadcast %c15_i32_105 : i32 to vector<24x128xi32>
    %163 = arith.cmpi slt, %7, %162 : vector<24x128xi32>
    %164 = arith.select %163, %161, %160 : vector<24x128xi1>, vector<24x128xf32>
    %165 = arith.maximumf %159, %164 : vector<24x128xf32>
    %c16_i32_106 = arith.constant 16 : i32
    %166 = tpu.dynamic_rotate %165 by %c16_i32_106 dim 1 : vector<24x128xf32>, i32 -> vector<24x128xf32>
    %167 = arith.maximumf %165, %166 : vector<24x128xf32>
    %c112_i32_107 = arith.constant 112 : i32
    %168 = tpu.dynamic_rotate %165 by %c112_i32_107 dim 1 : vector<24x128xf32>, i32 -> vector<24x128xf32>
    %169 = arith.maximumf %167, %168 : vector<24x128xf32>
    %c0_108 = arith.constant 0 : index
    %170 = memref.load %arg1[%c0_108] : memref<1xf32, #tpu.memory_space<smem>>
    %171 = vector.extract_strided_slice %169 {offsets = [0, 0], sizes = [8, 128], strides = [1, 1]} : vector<24x128xf32> to vector<8x128xf32>
    %c1_i32_109 = arith.constant 1 : i32
    %172 = tpu.dynamic_rotate %171 by %c1_i32_109 dim 0 : vector<8x128xf32>, i32 -> vector<8x128xf32>
    %173 = arith.maximumf %171, %172 : vector<8x128xf32>
    %c7_i32 = arith.constant 7 : i32
    %174 = tpu.dynamic_rotate %171 by %c7_i32 dim 0 : vector<8x128xf32>, i32 -> vector<8x128xf32>
    %175 = arith.maximumf %173, %174 : vector<8x128xf32>
    %176 = vector.broadcast %170 : f32 to vector<8x128xf32>
    %177 = arith.cmpf oge, %175, %176 : vector<8x128xf32>
    %178 = vector.extract_strided_slice %153 {offsets = [0, 0], sizes = [8, 128], strides = [1, 1]} : vector<24x128xf32> to vector<8x128xf32>
    %cst_110 = arith.constant 0.000000e+00 : f32
    %179 = vector.broadcast %cst_110 : f32 to vector<8x128xf32>
    %180 = arith.select %177, %178, %179 : vector<8x128xi1>, vector<8x128xf32>
    %c0_111 = arith.constant 0 : index
    %c0_112 = arith.constant 0 : index
    %c0_113 = arith.constant 0 : index
    %181 = vector.load %arg5[%c0_111, %c0_112, %c0_113] : memref<1x24x128xf32, #tpu.memory_space<vmem>>, vector<1x8x128xf32>
    %182 = vector.shape_cast %181 : vector<1x8x128xf32> to vector<8x128xf32>
    %183 = vector.shape_cast %180 : vector<8x128xf32> to vector<1x8x128xf32>
    tpu.vector_store %arg5[%c0_111, %c0_112, %c0_113], %183 {strides = array<i32>} : memref<1x24x128xf32, #tpu.memory_space<vmem>>, vector<1x8x128xf32>,
    %184 = vector.extract_strided_slice %169 {offsets = [8, 0], sizes = [8, 128], strides = [1, 1]} : vector<24x128xf32> to vector<8x128xf32>
    %c1_i32_114 = arith.constant 1 : i32
    %185 = tpu.dynamic_rotate %184 by %c1_i32_114 dim 0 : vector<8x128xf32>, i32 -> vector<8x128xf32>
    %186 = arith.maximumf %184, %185 : vector<8x128xf32>
    %c7_i32_115 = arith.constant 7 : i32
    %187 = tpu.dynamic_rotate %184 by %c7_i32_115 dim 0 : vector<8x128xf32>, i32 -> vector<8x128xf32>
    %188 = arith.maximumf %186, %187 : vector<8x128xf32>
    %189 = vector.broadcast %170 : f32 to vector<8x128xf32>
    %190 = arith.cmpf oge, %188, %189 : vector<8x128xf32>
    %191 = vector.extract_strided_slice %153 {offsets = [8, 0], sizes = [8, 128], strides = [1, 1]} : vector<24x128xf32> to vector<8x128xf32>
    %cst_116 = arith.constant 0.000000e+00 : f32
    %192 = vector.broadcast %cst_116 : f32 to vector<8x128xf32>
    %193 = arith.select %190, %191, %192 : vector<8x128xi1>, vector<8x128xf32>
    %c0_117 = arith.constant 0 : index
    %c8_118 = arith.constant 8 : index
    %c0_119 = arith.constant 0 : index
    %194 = vector.load %arg5[%c0_117, %c8_118, %c0_119] : memref<1x24x128xf32, #tpu.memory_space<vmem>>, vector<1x8x128xf32>
    %195 = vector.shape_cast %194 : vector<1x8x128xf32> to vector<8x128xf32>
    %196 = vector.shape_cast %193 : vector<8x128xf32> to vector<1x8x128xf32>
    tpu.vector_store %arg5[%c0_117, %c8_118, %c0_119], %196 {strides = array<i32>} : memref<1x24x128xf32, #tpu.memory_space<vmem>>, vector<1x8x128xf32>,
    %197 = vector.extract_strided_slice %169 {offsets = [16, 0], sizes = [8, 128], strides = [1, 1]} : vector<24x128xf32> to vector<8x128xf32>
    %c1_i32_120 = arith.constant 1 : i32
    %198 = tpu.dynamic_rotate %197 by %c1_i32_120 dim 0 : vector<8x128xf32>, i32 -> vector<8x128xf32>
    %199 = arith.maximumf %197, %198 : vector<8x128xf32>
    %c7_i32_121 = arith.constant 7 : i32
    %200 = tpu.dynamic_rotate %197 by %c7_i32_121 dim 0 : vector<8x128xf32>, i32 -> vector<8x128xf32>
    %201 = arith.maximumf %199, %200 : vector<8x128xf32>
    %202 = vector.broadcast %170 : f32 to vector<8x128xf32>
    %203 = arith.cmpf oge, %201, %202 : vector<8x128xf32>
    %204 = vector.extract_strided_slice %153 {offsets = [16, 0], sizes = [8, 128], strides = [1, 1]} : vector<24x128xf32> to vector<8x128xf32>
    %cst_122 = arith.constant 0.000000e+00 : f32
    %205 = vector.broadcast %cst_122 : f32 to vector<8x128xf32>
    %206 = arith.select %203, %204, %205 : vector<8x128xi1>, vector<8x128xf32>
    %c0_123 = arith.constant 0 : index
    %c16_124 = arith.constant 16 : index
    %c0_125 = arith.constant 0 : index
    %207 = vector.load %arg5[%c0_123, %c16_124, %c0_125] : memref<1x24x128xf32, #tpu.memory_space<vmem>>, vector<1x8x128xf32>
    %208 = vector.shape_cast %207 : vector<1x8x128xf32> to vector<8x128xf32>
    %209 = vector.shape_cast %206 : vector<8x128xf32> to vector<1x8x128xf32>
    tpu.vector_store %arg5[%c0_123, %c16_124, %c0_125], %209 {strides = array<i32>} : memref<1x24x128xf32, #tpu.memory_space<vmem>>, vector<1x8x128xf32>,
    return
  }
  func.func @transform_0(%arg0: i32) -> i32 {
    %c0_i32 = arith.constant 0 : i32
    %c0_i32_0 = arith.constant 0 : i32
    return %c0_i32 : i32
  }
  func.func @transform_1(%arg0: i32) -> (i32, i32) {
    %c0_i32 = arith.constant 0 : i32
    %c0_i32_0 = arith.constant 0 : i32
    %c0_i32_1 = arith.constant 0 : i32
    return %c0_i32, %c0_i32_0 : i32, i32
  }
  func.func @transform_2(%arg0: i32) -> (i32, i32) {
    %c0_i32 = arith.constant 0 : i32
    %c0_i32_0 = arith.constant 0 : i32
    %c0_i32_1 = arith.constant 0 : i32
    return %c0_i32, %c0_i32_0 : i32, i32
  }
  func.func @transform_3(%arg0: i32) -> (i32, i32, i32) {
    %c0_i32 = arith.constant 0 : i32
    %c0_i32_0 = arith.constant 0 : i32
    %c0_i32_1 = arith.constant 0 : i32
    return %arg0, %c0_i32, %c0_i32_0 : i32, i32, i32
  }
  func.func @transform_4(%arg0: i32) -> (i32, i32, i32) {
    %c0_i32 = arith.constant 0 : i32
    %c0_i32_0 = arith.constant 0 : i32
    %c0_i32_1 = arith.constant 0 : i32
    return %arg0, %c0_i32, %c0_i32_0 : i32, i32, i32
  }
}

</mosaic_0001>

<llo_original>
// kernel: tpu_custom_call.1
$region0: #{tpu_custom_call.1}
  #allocation0 [shape = 'u32[]', space=smem, size = 0x4, offset = 0x4, fixed_abs, tag = 'smem constant byte address 0x4 - core index']
  #allocation1 [shape = 'u32[72,128]{1,0:T(1,128)}', space=vmem, size = 0x9000, scoped, tag = 'internal scratch']
  #allocation2 [shape = 'f32[224,128]{1,0:T(8,128)}', space=vmem, size = 0x1c000, scoped, tag = 'scratch operand']
  #allocation3 [shape = 'f32[1]{0:T(128)S(6)}', space=smem, size = 0x200, scoped, tag = 'scoped memory for tpu_custom_call.1']
  %s0 = inlined_call_operand.<no memory space> [shape: f32[1], index: 0, kind: input, shape index: {}]
  %s1 = inlined_call_operand.hbm [shape: f32[40,224], index: 1, kind: input, shape index: {}]
  %s2 = inlined_call_operand.hbm [shape: f32[24,40], index: 2, kind: input, shape index: {}]
  %s3 = inlined_call_operand.hbm [shape: f32[2,24,128], index: 3, kind: input, shape index: {}]
  %s4 = inlined_call_operand.hbm [shape: f32[2,24,128], index: 4, kind: output, shape index: {}]
  %s5 = sld [smem:[#allocation0]]
  $region61: #{tpu_custom_call.1} parent=0
    _
  %s7 = ssub.s32 1, %s5
  %s8 = scalar_select 0, %s7, %s5
  %9 = sst [smem:[#allocation3]] %s0
  $region1: #{tpu_custom_call.1} parent=0
    #allocation4 [shape = 'u8[40960]{0}', space=vmem, size = 0xa000, scoped, tag = 'input window, operand 1, single buffered']
    #allocation5 [shape = 's32[2]{0}', space=sflag, size = 0x8, scoped, tag = 'scoped memory for tpu_custom_call.1']
    #allocation6 [shape = 's32[2]{0}', space=sflag, size = 0x8, scoped, tag = 'scoped memory for tpu_custom_call.1']
    #allocation7 [shape = 'u8[12288]{0}', space=vmem, size = 0x3000, scoped, tag = 'input window, operand 2, single buffered']
    #allocation8 [shape = 's32[1]{0}', space=sflag, size = 0x4, scoped, tag = 'scoped memory for tpu_custom_call.1']
    #allocation9 [shape = 'u8[24576]{0}', space=vmem, size = 0x6000, scoped, tag = 'input window, operand 3']
    #allocation10 [shape = 'u8[24576]{0}', space=vmem, size = 0x6000, scoped, tag = 'output window, operand 0']
    %10 = vsyncpa [#allocation5], 0
    %11 = vsyncpa [#allocation8], 0
    %12 = vsyncpa [#allocation6], 0
    %s13 = scalar_lea.sflag [#allocation6], 1
    %14 = vsyncpa %s13, 0
    loop: start=0, step=1, limit=4
    $region2: #{tpu_custom_call.1} parent=1 // loop_pre_header
      _
    $region3: #{tpu_custom_call.1} parent=1 // loop_header
      %s16 = sphi 0, %s20
      %p17 = scmp.ge.s32.totalorder %s16, 4
      %s24 = sphi 0, %s24
      %s26 = sphi 0, %s24
      %s27 = sphi 0, %s26
      %s41 = sphi 0, %s27
      %s45 = sphi 0, %s45
      %s47 = sphi 0, %s45
      %s48 = sphi 0, %s47
      %s62 = sphi 0, %s48
      %s66 = sphi 0, %s66
      %s68 = sphi 0, %s66
      %s69 = sphi 0, %s68
      %s83 = sphi 0, %s69
      %s89 = sphi 0, %s91
      %s92 = sphi 0, %s89
      %s93 = sphi 0, %s92
      %s109 = sphi 0, %s93
      %s115 = sphi 0, %s117
      %s118 = sphi 0, %s115
      %s119 = sphi 0, %s118
      %s135 = sphi 0, %s119
    $region4: #{tpu_custom_call.1} parent=1 // loop_header_branch
      %19 = sbr.rel (%p17) target = $region8
    $region5: #{tpu_custom_call.1} parent=1 // loop_body
      %s21 = ssub.s32 %s16, 1
      %s22 = ssub.s32 %s16, 2
      %s23 = sadd.s32 %s16, 1
      %s25 = sadd.s32 %s24, 1
      %p28 = scmp.eq.s32.totalorder %s16, 1
      %p29 = scmp.ne.s32.totalorder %s24, %s26
      %p30 = scmp.eq.s32.totalorder %s16, 0
      %p31 = por %p29, %p30
      %p32 = scmp.ne.s32.totalorder %s24, %s26
      %p33 = scmp.eq.s32.totalorder %s21, 1
      %p34 = por %p32, %p33
      %p35 = scmp.ne.s32.totalorder %s26, %s27
      %p36 = scmp.eq.s32.totalorder %s21, 0
      %p37 = por %p35, %p36
      %p38 = scmp.ne.s32.totalorder %s26, %s27
      %p39 = scmp.eq.s32.totalorder %s22, 1
      %p40 = por %p38, %p39
      %p42 = scmp.ne.s32.totalorder %s27, %s41
      %p43 = scmp.eq.s32.totalorder %s22, 0
      %p44 = por %p42, %p43
      %s46 = sadd.s32 %s45, 1
      %p49 = scmp.eq.s32.totalorder %s16, 1
      %p50 = scmp.ne.s32.totalorder %s45, %s47
      %p51 = scmp.eq.s32.totalorder %s16, 0
      %p52 = por %p50, %p51
      %p53 = scmp.ne.s32.totalorder %s45, %s47
      %p54 = scmp.eq.s32.totalorder %s21, 1
      %p55 = por %p53, %p54
      %p56 = scmp.ne.s32.totalorder %s47, %s48
      %p57 = scmp.eq.s32.totalorder %s21, 0
      %p58 = por %p56, %p57
      %p59 = scmp.ne.s32.totalorder %s47, %s48
      %p60 = scmp.eq.s32.totalorder %s22, 1
      %p61 = por %p59, %p60
      %p63 = scmp.ne.s32.totalorder %s48, %s62
      %p64 = scmp.eq.s32.totalorder %s22, 0
      %p65 = por %p63, %p64
      %s67 = sadd.s32 %s66, 1
      %p70 = scmp.eq.s32.totalorder %s16, 1
      %p71 = scmp.ne.s32.totalorder %s66, %s68
      %p72 = scmp.eq.s32.totalorder %s16, 0
      %p73 = por %p71, %p72
      %p74 = scmp.ne.s32.totalorder %s66, %s68
      %p75 = scmp.eq.s32.totalorder %s21, 1
      %p76 = por %p74, %p75
      %p77 = scmp.ne.s32.totalorder %s68, %s69
      %p78 = scmp.eq.s32.totalorder %s21, 0
      %p79 = por %p77, %p78
      %p80 = scmp.ne.s32.totalorder %s68, %s69
      %p81 = scmp.eq.s32.totalorder %s22, 1
      %p82 = por %p80, %p81
      %p84 = scmp.ne.s32.totalorder %s69, %s83
      %p85 = scmp.eq.s32.totalorder %s22, 0
      %p86 = por %p84, %p85
      %s87 = ssub.s32 %s16, %s23
      %p88 = scmp.eq.s32.totalorder %s87, 0
      %s90 = sadd.s32 %s89, 1
      %s91 = scalar_select %p88, %s89, %s90
      %p94 = pneg %p88
      %p95 = scmp.eq.s32.totalorder %s16, 1
      %p96 = por %p94, %p95
      %p97 = scmp.ne.s32.totalorder %s89, %s92
      %p98 = scmp.eq.s32.totalorder %s16, 0
      %p99 = por %p97, %p98
      %p100 = scmp.ne.s32.totalorder %s89, %s92
      %p101 = scmp.eq.s32.totalorder %s21, 1
      %p102 = por %p100, %p101
      %p103 = scmp.ne.s32.totalorder %s92, %s93
      %p104 = scmp.eq.s32.totalorder %s21, 0
      %p105 = por %p103, %p104
      %p106 = scmp.ne.s32.totalorder %s92, %s93
      %p107 = scmp.eq.s32.totalorder %s22, 1
      %p108 = por %p106, %p107
      %p110 = scmp.ne.s32.totalorder %s93, %s109
      %p111 = scmp.eq.s32.totalorder %s22, 0
      %p112 = por %p110, %p111
      %s113 = ssub.s32 %s16, %s23
      %p114 = scmp.eq.s32.totalorder %s113, 0
      %s116 = sadd.s32 %s115, 1
      %s117 = scalar_select %p114, %s115, %s116
      %p120 = pneg %p114
      %p121 = scmp.eq.s32.totalorder %s16, 1
      %p122 = por %p120, %p121
      %p123 = scmp.ne.s32.totalorder %s115, %s118
      %p124 = scmp.eq.s32.totalorder %s16, 0
      %p125 = por %p123, %p124
      %p126 = scmp.ne.s32.totalorder %s115, %s118
      %p127 = scmp.eq.s32.totalorder %s21, 1
      %p128 = por %p126, %p127
      %p129 = scmp.ne.s32.totalorder %s118, %s119
      %p130 = scmp.eq.s32.totalorder %s21, 0
      %p131 = por %p129, %p130
      %p132 = scmp.ne.s32.totalorder %s118, %s119
      %p133 = scmp.eq.s32.totalorder %s22, 1
      %p134 = por %p132, %p133
      %p136 = scmp.ne.s32.totalorder %s119, %s135
      %p137 = scmp.eq.s32.totalorder %s22, 0
      %p138 = por %p136, %p137
      %p139 = scmp.le.s32.totalorder 1, %s16
      %p140 = scmp.lt.s32.totalorder %s16, 3
      %p141 = pnand %p139, %p140
      %p142 = pneg %p141
      // Predicated region
      $region9: #{tpu_custom_call.1} parent=5 // pred_check
        _
      $region10: #{tpu_custom_call.1} parent=5 // pred_check_branch
        %144 = sbr.rel (%p141) target = $region12
      $region11: #{tpu_custom_call.1} parent=5 // pred_region
        %s145 = ssub.s32 %s16, 1
        // Predicated region
        $region13: #{tpu_custom_call.1} parent=11 // pred_check
          %p146 = pneg %p37
        $region14: #{tpu_custom_call.1} parent=11 // pred_check_branch
          %148 = sbr.rel (%p146) target = $region16
        $region15: #{tpu_custom_call.1} parent=11 // pred_region
          _
        $region16: #{tpu_custom_call.1} parent=11 // pred_fallthru
          _
        // Predicated region
        $region17: #{tpu_custom_call.1} parent=11 // pred_check
          %p149 = pneg %p58
        $region18: #{tpu_custom_call.1} parent=11 // pred_check_branch
          %151 = sbr.rel (%p149) target = $region20
        $region19: #{tpu_custom_call.1} parent=11 // pred_region
          %153 = vsyncadd [#allocation5], 0
          %s154 = sshll.u32 %s1, 4
          %s155 = int_to_ptr.hbm [resolvable:$true] %s154
          %s156 = sshll.u32 [#allocation4], 4
          %s157 = int_to_ptr.vmem [resolvable:$true] %s156
          %162 = dma.hbm_to_vmem [thread:$0]  %s155, 1280, %s157, [#allocation5], 256, 256, 16
        $region20: #{tpu_custom_call.1} parent=11 // pred_fallthru
          _
        // Predicated region
        $region21: #{tpu_custom_call.1} parent=11 // pred_check
          %p163 = pneg %p79
        $region22: #{tpu_custom_call.1} parent=11 // pred_check_branch
          %165 = sbr.rel (%p163) target = $region24
        $region23: #{tpu_custom_call.1} parent=11 // pred_region
          %167 = vsyncadd [#allocation8], 0
          %s168 = sshll.u32 %s2, 4
          %s169 = int_to_ptr.hbm [resolvable:$true] %s168
          %s170 = sshll.u32 [#allocation7], 4
          %s171 = int_to_ptr.vmem [resolvable:$true] %s170
          %176 = dma.hbm_to_vmem [thread:$0]  %s169, 384, %s171, [#allocation8], 128, 128, 8
        $region24: #{tpu_custom_call.1} parent=11 // pred_fallthru
          _
      $region12: #{tpu_custom_call.1} parent=5 // pred_fallthru
        _
      %p177 = scmp.lt.s32.totalorder %s16, 2
      // Predicated region
      $region25: #{tpu_custom_call.1} parent=5 // pred_check
        %p178 = pneg %p177
      $region26: #{tpu_custom_call.1} parent=5 // pred_check_branch
        %180 = sbr.rel (%p178) target = $region28
      $region27: #{tpu_custom_call.1} parent=5 // pred_region
        // Predicated region
        $region29: #{tpu_custom_call.1} parent=27 // pred_check
          %p181 = pneg %p99
        $region30: #{tpu_custom_call.1} parent=27 // pred_check_branch
          %183 = sbr.rel (%p181) target = $region32
        $region31: #{tpu_custom_call.1} parent=27 // pred_region
          %s184 = sand.u32 %s16, 1
          %s185 = scalar_lea.sflag [#allocation5], %s184
          %s186 = sand.u32 %s89, 1
          %s187 = smul.addr %s186, 24
          %s188 = scalar_lea.vmem [#allocation9], %s187
          %190 = vsyncadd %s185, 0
          %s191 = smul.addr %s16, 3
          %s192 = smul.addr %s191, 8
          %s193 = scalar_lea.hbm %s3, %s192
          %s194 = sshll.u32 %s193, 4
          %s195 = int_to_ptr.hbm [resolvable:$true] %s194
          %s196 = sshll.u32 %s188, 4
          %s197 = int_to_ptr.vmem [resolvable:$true] %s196
          %202 = dma.hbm_to_vmem [thread:$0]  %s195, 384, %s197, %s185, 128, 128, 8
        $region32: #{tpu_custom_call.1} parent=27 // pred_fallthru
          _
      $region28: #{tpu_custom_call.1} parent=5 // pred_fallthru
        _
      %p203 = scmp.le.s32.totalorder 1, %s16
      %p204 = scmp.lt.s32.totalorder %s16, 3
      %p205 = pnand %p203, %p204
      %p206 = pneg %p205
      // Predicated region
      $region33: #{tpu_custom_call.1} parent=5 // pred_check
        _
      $region34: #{tpu_custom_call.1} parent=5 // pred_check_branch
        %208 = sbr.rel (%p205) target = $region36
      $region35: #{tpu_custom_call.1} parent=5 // pred_region
        %s209 = ssub.s32 %s16, 1
        // Predicated region
        $region37: #{tpu_custom_call.1} parent=35 // pred_check
          %p210 = pneg %p58
        $region38: #{tpu_custom_call.1} parent=35 // pred_check_branch
          %212 = sbr.rel (%p210) target = $region40
        $region39: #{tpu_custom_call.1} parent=35 // pred_region
          %214 = dma.done [#allocation5], 1280
        $region40: #{tpu_custom_call.1} parent=35 // pred_fallthru
          _
        // Predicated region
        $region41: #{tpu_custom_call.1} parent=35 // pred_check
          %p215 = pneg %p79
        $region42: #{tpu_custom_call.1} parent=35 // pred_check_branch
          %217 = sbr.rel (%p215) target = $region44
        $region43: #{tpu_custom_call.1} parent=35 // pred_region
          %219 = dma.done [#allocation8], 384
        $region44: #{tpu_custom_call.1} parent=35 // pred_fallthru
          _
        %s220 = sand.u32 %s21, 1
        %s221 = scalar_lea.sflag [#allocation5], %s220
        %s222 = sand.u32 %s92, 1
        %s223 = smul.addr %s222, 24
        %s224 = scalar_lea.vmem [#allocation9], %s223
        // Predicated region
        $region45: #{tpu_custom_call.1} parent=35 // pred_check
          %p225 = pneg %p105
        $region46: #{tpu_custom_call.1} parent=35 // pred_check_branch
          %227 = sbr.rel (%p225) target = $region48
        $region47: #{tpu_custom_call.1} parent=35 // pred_region
          %229 = dma.done %s221, 384
        $region48: #{tpu_custom_call.1} parent=35 // pred_fallthru
          _
        %p230 = pneg %p37
        %p231 = pneg %p34
        %p232 = pneg %p58
        %p233 = pneg %p55
        %p234 = pneg %p79
        %p235 = pneg %p76
        %s236 = sand.u32 %s21, 1
        %s237 = scalar_lea.sflag [#allocation5], %s236
        %s238 = sand.u32 %s92, 1
        %s239 = smul.addr %s238, 24
        %s240 = scalar_lea.vmem [#allocation9], %s239
        %p241 = pneg %p105
        %p242 = pneg %p102
        %p243 = pneg %p131
        %p244 = pneg %p128
        %s245 = sand.u32 %s118, 1
        %s246 = scalar_lea.sflag [#allocation6], %s245
        %s247 = sand.u32 %s118, 1
        %s248 = smul.addr %s247, 24
        %s249 = scalar_lea.vmem [#allocation10], %s248
        %v250 = vld [vmem:[%s224] sm:$0xff]
        %v251 = vld [vmem:[%s224 + $0x8] sm:$0xff]
        %v252 = vld [vmem:[%s224 + $0x10] sm:$0xff]
        %v253 = vlaneseq
        %v254 = vand.u32 %v253, 127
        %v255 = vand.u32 %v254, 15
        %256 = vrot.lane.b32.xlu0 %v250, 16
        %v257 = vpop.permute.xlu0 %256
        %258 = vrot.lane.b32.xlu0 %v257, 1
        %v259 = vpop.permute.xlu0 %258
        %260 = vrot.lane.b32.xlu0 %v257, 113
        %v261 = vpop.permute.xlu0 %260
        %vm262 = vcmp.lt.s32.totalorder %v255, 1
        %v263 = vsel %vm262, %v261, %v259
        %264 = vst [vmem:[#allocation2] sm:$0xff] %v263
        %265 = vst [vmem:[#allocation2 + $0x8] sm:$0xff] %v257
        %266 = vrot.lane.b32.xlu0 %v257, 15
        %v267 = vpop.permute.xlu0 %266
        %268 = vrot.lane.b32.xlu0 %v257, 127
        %v269 = vpop.permute.xlu0 %268
        %vm270 = vcmp.lt.s32.totalorder %v255, 15
        %v271 = vsel %vm270, %v269, %v267
        %272 = vst [vmem:[#allocation2 + $0x10] sm:$0xff] %v271
        %273 = vrot.lane.b32.xlu0 %v250, 1
        %v274 = vpop.permute.xlu0 %273
        %275 = vrot.lane.b32.xlu0 %v250, 113
        %v276 = vpop.permute.xlu0 %275
        %v277 = vsel %vm262, %v276, %v274
        %278 = vst [vmem:[#allocation2 + $0x18] sm:$0xff] %v277
        %279 = vst [vmem:[#allocation2 + $0x20] sm:$0xff] %v250
        %280 = vrot.lane.b32.xlu0 %v250, 15
        %v281 = vpop.permute.xlu0 %280
        %282 = vrot.lane.b32.xlu0 %v250, 127
        %v283 = vpop.permute.xlu0 %282
        %v284 = vsel %vm270, %v283, %v281
        %285 = vst [vmem:[#allocation2 + $0x28] sm:$0xff] %v284
        %286 = vrot.lane.b32.xlu0 %v250, 112
        %v287 = vpop.permute.xlu0 %286
        %288 = vrot.lane.b32.xlu0 %v287, 1
        %v289 = vpop.permute.xlu0 %288
        %290 = vrot.lane.b32.xlu0 %v287, 113
        %v291 = vpop.permute.xlu0 %290
        %v292 = vsel %vm262, %v291, %v289
        %293 = vst [vmem:[#allocation2 + $0x30] sm:$0xff] %v292
        %294 = vst [vmem:[#allocation2 + $0x38] sm:$0xff] %v287
        %295 = vrot.lane.b32.xlu0 %v287, 15
        %v296 = vpop.permute.xlu0 %295
        %297 = vrot.lane.b32.xlu0 %v287, 127
        %v298 = vpop.permute.xlu0 %297
        %v299 = vsel %vm270, %v298, %v296
        %300 = vst [vmem:[#allocation2 + $0x40] sm:$0xff] %v299
        %301 = vrot.lane.b32.xlu0 %v251, 16
        %v302 = vpop.permute.xlu0 %301
        %303 = vrot.lane.b32.xlu0 %v302, 1
        %v304 = vpop.permute.xlu0 %303
        %305 = vrot.lane.b32.xlu0 %v302, 113
        %v306 = vpop.permute.xlu0 %305
        %v307 = vsel %vm262, %v306, %v304
        %308 = vst [vmem:[#allocation2 + $0x48] sm:$0xff] %v307
        %309 = vst [vmem:[#allocation2 + $0x50] sm:$0xff] %v302
        %310 = vrot.lane.b32.xlu0 %v302, 15
        %v311 = vpop.permute.xlu0 %310
        %312 = vrot.lane.b32.xlu0 %v302, 127
        %v313 = vpop.permute.xlu0 %312
        %v314 = vsel %vm270, %v313, %v311
        %315 = vst [vmem:[#allocation2 + $0x58] sm:$0xff] %v314
        %316 = vrot.lane.b32.xlu0 %v251, 1
        %v317 = vpop.permute.xlu0 %316
        %318 = vrot.lane.b32.xlu0 %v251, 113
        %v319 = vpop.permute.xlu0 %318
        %v320 = vsel %vm262, %v319, %v317
        %321 = vst [vmem:[#allocation2 + $0x60] sm:$0xff] %v320
        %322 = vst [vmem:[#allocation2 + $0x68] sm:$0xff] %v251
        %323 = vrot.lane.b32.xlu0 %v251, 15
        %v324 = vpop.permute.xlu0 %323
        %325 = vrot.lane.b32.xlu0 %v251, 127
        %v326 = vpop.permute.xlu0 %325
        %v327 = vsel %vm270, %v326, %v324
        %328 = vst [vmem:[#allocation2 + $0x70] sm:$0xff] %v327
        %329 = vrot.lane.b32.xlu0 %v251, 112
        %v330 = vpop.permute.xlu0 %329
        %331 = vrot.lane.b32.xlu0 %v330, 1
        %v332 = vpop.permute.xlu0 %331
        %333 = vrot.lane.b32.xlu0 %v330, 113
        %v334 = vpop.permute.xlu0 %333
        %v335 = vsel %vm262, %v334, %v332
        %336 = vst [vmem:[#allocation2 + $0x78] sm:$0xff] %v335
        %337 = vst [vmem:[#allocation2 + $0x80] sm:$0xff] %v330
        %338 = vrot.lane.b32.xlu0 %v330, 15
        %v339 = vpop.permute.xlu0 %338
        %340 = vrot.lane.b32.xlu0 %v330, 127
        %v341 = vpop.permute.xlu0 %340
        %v342 = vsel %vm270, %v341, %v339
        %343 = vst [vmem:[#allocation2 + $0x88] sm:$0xff] %v342
        %344 = vrot.lane.b32.xlu0 %v252, 16
        %v345 = vpop.permute.xlu0 %344
        %346 = vrot.lane.b32.xlu0 %v345, 1
        %v347 = vpop.permute.xlu0 %346
        %348 = vrot.lane.b32.xlu0 %v345, 113
        %v349 = vpop.permute.xlu0 %348
        %v350 = vsel %vm262, %v349, %v347
        %351 = vst [vmem:[#allocation2 + $0x90] sm:$0xff] %v350
        %352 = vst [vmem:[#allocation2 + $0x98] sm:$0xff] %v345
        %353 = vrot.lane.b32.xlu0 %v345, 15
        %v354 = vpop.permute.xlu0 %353
        %355 = vrot.lane.b32.xlu0 %v345, 127
        %v356 = vpop.permute.xlu0 %355
        %v357 = vsel %vm270, %v356, %v354
        %358 = vst [vmem:[#allocation2 + $0xa0] sm:$0xff] %v357
        %359 = vrot.lane.b32.xlu0 %v252, 1
        %v360 = vpop.permute.xlu0 %359
        %361 = vrot.lane.b32.xlu0 %v252, 113
        %v362 = vpop.permute.xlu0 %361
        %v363 = vsel %vm262, %v362, %v360
        %364 = vst [vmem:[#allocation2 + $0xa8] sm:$0xff] %v363
        %365 = vst [vmem:[#allocation2 + $0xb0] sm:$0xff] %v252
        %366 = vrot.lane.b32.xlu0 %v252, 15
        %v367 = vpop.permute.xlu0 %366
        %368 = vrot.lane.b32.xlu0 %v252, 127
        %v369 = vpop.permute.xlu0 %368
        %v370 = vsel %vm270, %v369, %v367
        %371 = vst [vmem:[#allocation2 + $0xb8] sm:$0xff] %v370
        %372 = vrot.lane.b32.xlu0 %v252, 112
        %v373 = vpop.permute.xlu0 %372
        %374 = vrot.lane.b32.xlu0 %v373, 1
        %v375 = vpop.permute.xlu0 %374
        %376 = vrot.lane.b32.xlu0 %v373, 113
        %v377 = vpop.permute.xlu0 %376
        %v378 = vsel %vm262, %v377, %v375
        %379 = vst [vmem:[#allocation2 + $0xc0] sm:$0xff] %v378
        %380 = vst [vmem:[#allocation2 + $0xc8] sm:$0xff] %v373
        %381 = vrot.lane.b32.xlu0 %v373, 15
        %v382 = vpop.permute.xlu0 %381
        %383 = vrot.lane.b32.xlu0 %v373, 127
        %v384 = vpop.permute.xlu0 %383
        %v385 = vsel %vm270, %v384, %v382
        %386 = vst [vmem:[#allocation2 + $0xd0] sm:$0xff] %v385
        %387 = vst [vmem:[#allocation2 + $0xd8] sm:$0xff] 1.0
        %v388 = vld [vmem:[#allocation4] sm:$0xff]
        %v389 = vld [vmem:[#allocation4 + $0x8] sm:$0xff]
        %v390 = vld [vmem:[#allocation4 + $0x10] sm:$0xff]
        %v391 = vld [vmem:[#allocation4 + $0x18] sm:$0xff]
        %v392 = vld [vmem:[#allocation4 + $0x20] sm:$0xff]
        %v393 = vld [vmem:[#allocation4 + $0x28] sm:$0xff]
        %v394 = vld [vmem:[#allocation4 + $0x30] sm:$0xff]
        %v395 = vld [vmem:[#allocation4 + $0x38] sm:$0xff]
        %v396 = vld [vmem:[#allocation4 + $0x40] sm:$0xff]
        %v397 = vld [vmem:[#allocation4 + $0x48] sm:$0xff]
        %v398 = vld [vmem:[#allocation2] sm:$0xff]
        %v399 = vld [vmem:[#allocation2 + $0x8] sm:$0xff]
        %v400 = vld [vmem:[#allocation2 + $0x10] sm:$0xff]
        %v401 = vld [vmem:[#allocation2 + $0x18] sm:$0xff]
        %v402 = vld [vmem:[#allocation2 + $0x20] sm:$0xff]
        %v403 = vld [vmem:[#allocation2 + $0x28] sm:$0xff]
        %v404 = vld [vmem:[#allocation2 + $0x30] sm:$0xff]
        %v405 = vld [vmem:[#allocation2 + $0x38] sm:$0xff]
        %v406 = vld [vmem:[#allocation2 + $0x40] sm:$0xff]
        %v407 = vld [vmem:[#allocation2 + $0x48] sm:$0xff]
        %v408 = vld [vmem:[#allocation2 + $0x50] sm:$0xff]
        %v409 = vld [vmem:[#allocation2 + $0x58] sm:$0xff]
        %v410 = vld [vmem:[#allocation2 + $0x60] sm:$0xff]
        %v411 = vld [vmem:[#allocation2 + $0x68] sm:$0xff]
        %v412 = vld [vmem:[#allocation2 + $0x70] sm:$0xff]
        %v413 = vld [vmem:[#allocation2 + $0x78] sm:$0xff]
        %v414 = vld [vmem:[#allocation2 + $0x80] sm:$0xff]
        %v415 = vld [vmem:[#allocation2 + $0x88] sm:$0xff]
        %v416 = vld [vmem:[#allocation2 + $0x90] sm:$0xff]
        %v417 = vld [vmem:[#allocation2 + $0x98] sm:$0xff]
        %v418 = vld [vmem:[#allocation2 + $0xa0] sm:$0xff]
        %v419 = vld [vmem:[#allocation2 + $0xa8] sm:$0xff]
        %v420 = vld [vmem:[#allocation2 + $0xb0] sm:$0xff]
        %v421 = vld [vmem:[#allocation2 + $0xb8] sm:$0xff]
        %v422 = vld [vmem:[#allocation2 + $0xc0] sm:$0xff]
        %v423 = vld [vmem:[#allocation2 + $0xc8] sm:$0xff]
        %v424 = vld [vmem:[#allocation2 + $0xd0] sm:$0xff]
        %v425 = vld [vmem:[#allocation2 + $0xd8] sm:$0xff]
        %vm426 = vcmask 785408
        %v428 = vsel %vm426, %v389, 0
        %v431 = vsel %vm426, %v391, 0
        %v434 = vsel %vm426, %v393, 0
        %v437 = vsel %vm426, %v395, 0
        %v440 = vsel %vm426, %v397, 0
        %442 = vmatpush.msra.mxu0 %v413
        %443 = vmatpush.msra.mxu0 %v412
        %444 = vmatpush.msra.mxu0 %v411
        %445 = vmatpush.msra.mxu0 %v410
        %446 = vmatpush.msra.mxu0 %v409
        %447 = vmatpush.msra.mxu0 %v408
        %448 = vmatpush.msra.mxu0 %v407
        %449 = vmatpush.msra.mxu0 %v406
        %450 = vmatpush.msra.mxu0 %v405
        %451 = vmatpush.msra.mxu0 %v404
        %452 = vmatpush.msra.mxu0 %v403
        %453 = vmatpush.msra.mxu0 %v402
        %454 = vmatpush.msra.mxu0 %v401
        %455 = vmatpush.msra.mxu0 %v400
        %456 = vmatpush.msra.mxu0 %v399
        %457 = vmatpush.msra.mxu0 %v398
        %458 = vmatmul.f32.gmra.mxu0 %v388
        %v459 = vpop.f32.mrf.mxu0
        %v460 = vadd.f32 0.0, %v459
        %461 = vmatmul.f32.gmra.mxu0 %v390
        %v462 = vpop.f32.mrf.mxu0
        %v463 = vadd.f32 0.0, %v462
        %464 = vmatmul.f32.gmra.mxu0 %v392
        %v465 = vpop.f32.mrf.mxu0
        %v466 = vadd.f32 0.0, %v465
        %467 = vmatmul.f32.gmra.mxu0 %v394
        %v468 = vpop.f32.mrf.mxu0
        %v469 = vadd.f32 0.0, %v468
        %470 = vmatmul.f32.gmra.mxu0 %v396
        %v471 = vpop.f32.mrf.mxu0
        %v472 = vadd.f32 0.0, %v471
        %473 = vdwg.mxu0
        %474 = vmatpush.msra.mxu0 0.0
        %475 = vmatpush.msra.mxu0 0.0
        %476 = vmatpush.msra.mxu0 0.0
        %477 = vmatpush.msra.mxu0 0.0
        %478 = vmatpush.msra.mxu0 %v425
        %479 = vmatpush.msra.mxu0 %v424
        %480 = vmatpush.msra.mxu0 %v423
        %481 = vmatpush.msra.mxu0 %v422
        %482 = vmatpush.msra.mxu0 %v421
        %483 = vmatpush.msra.mxu0 %v420
        %484 = vmatpush.msra.mxu0 %v419
        %485 = vmatpush.msra.mxu0 %v418
        %486 = vmatpush.msra.mxu0 %v417
        %487 = vmatpush.msra.mxu0 %v416
        %488 = vmatpush.msra.mxu0 %v415
        %489 = vmatpush.msra.mxu0 %v414
        %490 = vmatmul.f32.gmra.mxu0 %v428
        %v491 = vpop.f32.mrf.mxu0
        %v492 = vadd.f32 %v460, %v491
        %493 = vmatmul.f32.gmra.mxu0 %v431
        %v494 = vpop.f32.mrf.mxu0
        %v495 = vadd.f32 %v463, %v494
        %496 = vmatmul.f32.gmra.mxu0 %v434
        %v497 = vpop.f32.mrf.mxu0
        %v498 = vadd.f32 %v466, %v497
        %499 = vmatmul.f32.gmra.mxu0 %v437
        %v500 = vpop.f32.mrf.mxu0
        %v501 = vadd.f32 %v469, %v500
        %502 = vmatmul.f32.gmra.mxu0 %v440
        %v503 = vpop.f32.mrf.mxu0
        %v504 = vadd.f32 %v472, %v503
        %505 = vdwg.mxu0
        %v506 = vmul.f32 %v492, %v492
        %v507 = vmul.f32 %v495, %v495
        %v508 = vmul.f32 %v498, %v498
        %v509 = vmul.f32 %v501, %v501
        %v510 = vmul.f32 %v504, %v504
        %v511 = vsub.f32 0.0, %v506
        %v512 = vsub.f32 0.0, %v507
        %v513 = vsub.f32 0.0, %v508
        %v514 = vsub.f32 0.0, %v509
        %v515 = vsub.f32 0.0, %v510
        %v516 = vmul.f32 %v511, 1.442695
        %v517 = vpow.pop %v516
        %v518 = vmul.f32 %v512, 1.442695
        %v519 = vpow.pop %v518
        %v520 = vmul.f32 %v513, 1.442695
        %v521 = vpow.pop %v520
        %v522 = vmul.f32 %v514, 1.442695
        %v523 = vpow.pop %v522
        %v524 = vmul.f32 %v515, 1.442695
        %v525 = vpow.pop %v524
        %v526 = vmul.f32 %v517, 2.0
        %v527 = vmul.f32 %v519, 2.0
        %v528 = vmul.f32 %v521, 2.0
        %v529 = vmul.f32 %v523, 2.0
        %v530 = vmul.f32 %v525, 2.0
        %v531 = vsub.f32 %v526, 1.0
        %v532 = vsub.f32 %v527, 1.0
        %v533 = vsub.f32 %v528, 1.0
        %v534 = vsub.f32 %v529, 1.0
        %v535 = vsub.f32 %v530, 1.0
        %v536 = vld [vmem:[#allocation7] sm:$0xff]
        %v537 = vld [vmem:[#allocation7 + $0x8] sm:$0xff]
        %v538 = vld [vmem:[#allocation7 + $0x10] sm:$0xff]
        %vm539 = vcmask 326656
        %v541 = vsel %vm539, %v536, 0
        %v544 = vsel %vm539, %v537, 0
        %v547 = vsel %vm539, %v538, 0
        %549 = vmatpush.msra.mxu0 0.0
        %550 = vmatpush.msra.mxu0 0.0
        %551 = vmatpush.msra.mxu0 0.0
        %552 = vmatpush.msra.mxu0 0.0
        %553 = vmatpush.msra.mxu0 0.0
        %554 = vmatpush.msra.mxu0 0.0
        %555 = vmatpush.msra.mxu0 0.0
        %556 = vmatpush.msra.mxu0 0.0
        %557 = vmatpush.msra.mxu0 0.0
        %558 = vmatpush.msra.mxu0 0.0
        %559 = vmatpush.msra.mxu0 0.0
        %560 = vmatpush.msra.mxu0 %v535
        %561 = vmatpush.msra.mxu0 %v534
        %562 = vmatpush.msra.mxu0 %v533
        %563 = vmatpush.msra.mxu0 %v532
        %564 = vmatpush.msra.mxu0 %v531
        %565 = vmatmul.f32.gmra.mxu0 %v541
        %v566 = vpop.f32.mrf.mxu0
        %v567 = vadd.f32 0.0, %v566
        %568 = vmatmul.f32.gmra.mxu0 %v544
        %v569 = vpop.f32.mrf.mxu0
        %v570 = vadd.f32 0.0, %v569
        %571 = vmatmul.f32.gmra.mxu0 %v547
        %v572 = vpop.f32.mrf.mxu0
        %v573 = vadd.f32 0.0, %v572
        %574 = vdwg.mxu0
        %v575 = vadd.f32 %v250, %v567
        %v576 = vadd.f32 %v251, %v570
        %v577 = vadd.f32 %v252, %v573
        %v578 = vmax.f32 %v575, 0.0
        %v579 = vmax.f32 %v576, 0.0
        %v580 = vmax.f32 %v577, 0.0
        %v581 = vmin.f32 %v578, 1.0
        %v582 = vmin.f32 %v579, 1.0
        %v583 = vmin.f32 %v580, 1.0
        %584 = vrot.lane.b32.xlu0 %v581, 1
        %v585 = vpop.permute.xlu0 %584
        %586 = vrot.lane.b32.xlu0 %v582, 1
        %v587 = vpop.permute.xlu0 %586
        %588 = vrot.lane.b32.xlu0 %v583, 1
        %v589 = vpop.permute.xlu0 %588
        %590 = vrot.lane.b32.xlu0 %v581, 113
        %v591 = vpop.permute.xlu0 %590
        %592 = vrot.lane.b32.xlu0 %v582, 113
        %v593 = vpop.permute.xlu0 %592
        %594 = vrot.lane.b32.xlu0 %v583, 113
        %v595 = vpop.permute.xlu0 %594
        %v596 = vsel %vm262, %v591, %v585
        %v597 = vsel %vm262, %v593, %v587
        %v598 = vsel %vm262, %v595, %v589
        %v599 = vmax.f32 %v581, %v596
        %v600 = vmax.f32 %v582, %v597
        %v601 = vmax.f32 %v583, %v598
        %602 = vrot.lane.b32.xlu0 %v581, 15
        %v603 = vpop.permute.xlu0 %602
        %604 = vrot.lane.b32.xlu0 %v582, 15
        %v605 = vpop.permute.xlu0 %604
        %606 = vrot.lane.b32.xlu0 %v583, 15
        %v607 = vpop.permute.xlu0 %606
        %608 = vrot.lane.b32.xlu0 %v581, 127
        %v609 = vpop.permute.xlu0 %608
        %610 = vrot.lane.b32.xlu0 %v582, 127
        %v611 = vpop.permute.xlu0 %610
        %612 = vrot.lane.b32.xlu0 %v583, 127
        %v613 = vpop.permute.xlu0 %612
        %v614 = vsel %vm270, %v609, %v603
        %v615 = vsel %vm270, %v611, %v605
        %v616 = vsel %vm270, %v613, %v607
        %v617 = vmax.f32 %v599, %v614
        %v618 = vmax.f32 %v600, %v615
        %v619 = vmax.f32 %v601, %v616
        %620 = vrot.lane.b32.xlu0 %v617, 16
        %v621 = vpop.permute.xlu0 %620
        %622 = vrot.lane.b32.xlu0 %v618, 16
        %v623 = vpop.permute.xlu0 %622
        %624 = vrot.lane.b32.xlu0 %v619, 16
        %v625 = vpop.permute.xlu0 %624
        %v626 = vmax.f32 %v617, %v621
        %v627 = vmax.f32 %v618, %v623
        %v628 = vmax.f32 %v619, %v625
        %629 = vrot.lane.b32.xlu0 %v617, 112
        %v630 = vpop.permute.xlu0 %629
        %631 = vrot.lane.b32.xlu0 %v618, 112
        %v632 = vpop.permute.xlu0 %631
        %633 = vrot.lane.b32.xlu0 %v619, 112
        %v634 = vpop.permute.xlu0 %633
        %v635 = vmax.f32 %v626, %v630
        %v636 = vmax.f32 %v627, %v632
        %v637 = vmax.f32 %v628, %v634
        %s638 = sld [smem:[#allocation3]]
        %v639 = vrot.slane %v635, 7
        %v640 = vmax.f32 %v635, %v639
        %v641 = vrot.slane %v635, 1
        %v642 = vmax.f32 %v640, %v641
        %v643 = vstv %s638
        %vm644 = vcmp.ge.f32.partialorder %v642, %v643
        %v645 = vsel %vm644, %v581, 0.0
        %646 = vst [vmem:[%s249] sm:$0xff] %v645
        %v647 = vrot.slane %v636, 7
        %v648 = vmax.f32 %v636, %v647
        %v649 = vrot.slane %v636, 1
        %v650 = vmax.f32 %v648, %v649
        %vm651 = vcmp.ge.f32.partialorder %v650, %v643
        %v652 = vsel %vm651, %v582, 0.0
        %653 = vst [vmem:[%s249 + $0x8] sm:$0xff] %v652
        %v654 = vrot.slane %v637, 7
        %v655 = vmax.f32 %v637, %v654
        %v656 = vrot.slane %v637, 1
        %v657 = vmax.f32 %v655, %v656
        %vm658 = vcmp.ge.f32.partialorder %v657, %v643
        %v659 = vsel %vm658, %v583, 0.0
        %660 = vst [vmem:[%s249 + $0x10] sm:$0xff] %v659
        %s661 = sand.u32 %s118, 1
        %s662 = scalar_lea.sflag [#allocation6], %s661
        %s663 = sand.u32 %s118, 1
        %s664 = smul.addr %s663, 24
        %s665 = scalar_lea.vmem [#allocation10], %s664
        // Predicated region
        $region49: #{tpu_custom_call.1} parent=35 // pred_check
          %p666 = pneg %p128
        $region50: #{tpu_custom_call.1} parent=35 // pred_check_branch
          %668 = sbr.rel (%p666) target = $region52
        $region51: #{tpu_custom_call.1} parent=35 // pred_region
          %670 = vsyncadd %s662, 0
          %s671 = smul.addr %s21, 3
          %s672 = smul.addr %s671, 8
          %s673 = scalar_lea.hbm %s4, %s672
          %s674 = sshll.u32 %s665, 4
          %s675 = int_to_ptr.vmem [resolvable:$true] %s674
          %s676 = sshll.u32 %s673, 4
          %s677 = int_to_ptr.hbm [resolvable:$true] %s676
          %682 = dma.vmem_to_hbm [thread:$0]  %s675, 384, %s677, %s662, 128, 128, 8
        $region52: #{tpu_custom_call.1} parent=35 // pred_fallthru
          _
      $region36: #{tpu_custom_call.1} parent=5 // pred_fallthru
        _
      %p683 = scmp.le.s32.totalorder 2, %s16
      // Predicated region
      $region53: #{tpu_custom_call.1} parent=5 // pred_check
        %p684 = pneg %p683
      $region54: #{tpu_custom_call.1} parent=5 // pred_check_branch
        %686 = sbr.rel (%p684) target = $region56
      $region55: #{tpu_custom_call.1} parent=5 // pred_region
        %s687 = ssub.s32 %s16, 2
        // Predicated region
        $region57: #{tpu_custom_call.1} parent=55 // pred_check
          %p688 = pneg %p134
        $region58: #{tpu_custom_call.1} parent=55 // pred_check_branch
          %690 = sbr.rel (%p688) target = $region60
        $region59: #{tpu_custom_call.1} parent=55 // pred_region
          %s691 = sand.u32 %s119, 1
          %s692 = scalar_lea.sflag [#allocation6], %s691
          %s693 = sand.u32 %s119, 1
          %s694 = smul.addr %s693, 24
          %s695 = scalar_lea.vmem [#allocation10], %s694
          %697 = dma.done %s692, 384
        $region60: #{tpu_custom_call.1} parent=55 // pred_fallthru
          _
      $region56: #{tpu_custom_call.1} parent=5 // pred_fallthru
        _
    $region6: #{tpu_custom_call.1} parent=1 // loop_footer
      %s20 = sadd.s32 1, %s16
    $region7: #{tpu_custom_call.1} parent=1 // loop_footer_branch
      %15 = sbr.rel target = $region3
    $region8: #{tpu_custom_call.1} parent=1 // loop_exit
      _
    %698 = vsyncpa [#allocation5], 1
    %s699 = scalar_lea.sflag [#allocation5], 1
    %700 = vsyncpa %s699, 1
    %701 = vsyncpa [#allocation8], 1
    %702 = vsyncpa [#allocation6], 1
    %s703 = scalar_lea.sflag [#allocation6], 1
    %704 = vsyncpa %s703, 1

</llo_original>
